<compile_context>
chip_gen: v7x
topology: tpu7x:2x2x1
jax: 0.10.0
libtpu: 0.0.40
codegen_flags: <defaults>
</compile_context>

<pallas_src>
import functools

import jax
import jax.numpy as jnp
from jax.experimental import pallas as pl
from jax.experimental.pallas import tpu as pltpu

WINDOW_SIZE = 30
STRIDE = 15
TEMPERATURE = 0.15


def _peak_kernel(x_ref, m_ref, o_ref, *, npad, inv_temp):
    """x_ref: (TB, seq), m_ref: (seq, 2*npad), o_ref: (TB, npad)."""
    x = x_ref[...].astype(jnp.float32)                       # f32 math (v5e safe)

    # Row-max shift (softmax is shift-invariant within each window; the
    # exp(-rowmax/T) factors cancel in num/den).  Floor the exponent at -75 so
    # every exp term is a finite normal f32 -> denominator can never be 0.
    rowmax = jnp.max(x, axis=1, keepdims=True)
    arg = jnp.maximum((x - rowmax) * inv_temp, -75.0)
    e = jnp.exp(arg)                                          # (TB, seq), EUP

    # Single MXU matmul produces [num | den] for all windows at once.
    r = jnp.dot(e, m_ref[...], preferred_element_type=jnp.float32)  # (TB, 2*npad)
    num = r[:, :npad]
    den = r[:, npad:]

    # Padded (non-existent) windows have an all-zero SEL column -> den == 0.
    den = jnp.where(den > 0.0, den, 1.0)

    # EUP reciprocal seed + one Newton step (negligible VALU work on (TB, npad))
    # keeps full f32 accuracy while the heavy VALU/EUP load stays on `e`.
    inv = pl.reciprocal(den, approx=True)
    inv = inv * (2.0 - den * inv)

    o_ref[...] = (num * inv).astype(o_ref.dtype)


def sliding_window_peak_detector(x, *, window_size=WINDOW_SIZE, stride=STRIDE,
                                 temperature=TEMPERATURE):
    """JAX wrapper matching SlidingWindowPeakDetector.forward.

    Args:
      x: (batch, seq_length) array.
    Returns:
      (batch, num_windows) array of expected (soft-argmax) peak positions.
    """
    batch, seq_length = x.shape
    num_windows = (seq_length - window_size) // stride + 1
    assert num_windows >= 1, "sequence shorter than window"

    # Lane-dense padded window count.
    npad = ((num_windows + 127) // 128) * 128

    # Static window-membership matrices:
    #   SEL[j, i]  = 1 if sample j lies inside window i else 0
    #   IDXA[j, i] = j * SEL[j, i]   (absolute-index weight; since sum(p)=1 the
    #                                 "+ start" offset is folded in for free)
    j = jnp.arange(seq_length, dtype=jnp.int32)[:, None]           # (seq, 1)
    i = jnp.arange(npad, dtype=jnp.int32)[None, :]                 # (1, npad)
    starts = i * stride
    in_win = (i < num_windows) & (j >= starts) & (j < starts + window_size)
    sel = in_win.astype(jnp.float32)
    idx_abs = sel * j.astype(jnp.float32)
    m = jnp.concatenate([idx_abs, sel], axis=1)                    # (seq, 2*npad)

    # Batch tiling: full-batch block when small, otherwise 512-row tiles
    # (multiple of 8) so the pipeline double-buffers and fits v7x VMEM.
    tb = min(batch, 512)
    grid = (pl.cdiv(batch, tb),)

    kernel = functools.partial(
        _peak_kernel, npad=npad, inv_temp=float(1.0 / temperature))

    out = pl.pallas_call(
        kernel,
        out_shape=jax.ShapeDtypeStruct((batch, npad), x.dtype),
        grid=grid,
        in_specs=[
            pl.BlockSpec((tb, seq_length), lambda b: (b, 0)),
            pl.BlockSpec((seq_length, 2 * npad), lambda b: (0, 0)),
        ],
        out_specs=pl.BlockSpec((tb, npad), lambda b: (b, 0)),
        compiler_params=pltpu.CompilerParams(
            dimension_semantics=("parallel",)),
    )(x, m)

    # Strip lane padding (free layout plumbing in the wrapper).
    return out[:, :num_windows]


def _reference(x, window_size=WINDOW_SIZE, stride=STRIDE, temperature=TEMPERATURE):
    """Pure-JAX reference mirroring the PyTorch forward."""
    batch, seq_length = x.shape
    num_windows = (seq_length - window_size) // stride + 1
    idx = jnp.arange(window_size, dtype=x.dtype)[None, :]
    outs = []
    for i in range(num_windows):
        start = i * stride
        w = x[:, start:start + window_size] / temperature
        p = jax.nn.softmax(w, axis=1)
        outs.append((jnp.sum(p * idx, axis=1) + start)[:, None])
    return jnp.concatenate(outs, axis=1)


if __name__ == "__main__":
    key = jax.random.PRNGKey(0)
    batch, seq_length = 4, 128  # num_windows = (128 - 30) // 15 + 1 = 7
    x = jax.random.normal(key, (batch, seq_length), dtype=jnp.float32)

    out = sliding_window_peak_detector(x)
    out = jax.block_until_ready(out)

    ref = _reference(x)
    assert out.shape == (batch, (seq_length - WINDOW_SIZE) // STRIDE + 1), out.shape
    assert jnp.allclose(out, ref, atol=1e-3, rtol=1e-3), (out, ref)

    print("KERNEL_OK")
</pallas_src>

<mosaic_0001>
module attributes {stable_mosaic.version = 11 : i64} {
  func.func @_peak_kernel(%arg0: i32, %arg1: memref<4x128xf32, #tpu.memory_space<vmem>>, %arg2: memref<128x256xf32, #tpu.memory_space<vmem>>, %arg3: memref<4x128xf32, #tpu.memory_space<vmem>>) attributes {dimension_semantics = [#tpu.dimension_semantics<parallel>], iteration_bounds = array<i64: 1>, scalar_prefetch = 0 : i64, scratch_operands = 0 : i64, tpu.core_type = #tpu.core_type<tc>, window_params = [{transform_indices = @transform_0, window_bounds = array<i64: 4, 128>}, {pipeline_mode = #tpu.pipeline_mode<synchronous>, transform_indices = @transform_1, window_bounds = array<i64: 128, 256>}, {transform_indices = @transform_2, window_bounds = array<i64: 4, 128>}]} {
    %c0 = arith.constant 0 : index
    %c0_0 = arith.constant 0 : index
    %0 = vector.load %arg1[%c0, %c0_0] : memref<4x128xf32, #tpu.memory_space<vmem>>, vector<4x128xf32>
    %cst = arith.constant dense<0xFF800000> : vector<4xf32>
    %1 = vector.multi_reduction <maximumf>, %0, %cst [1] : vector<4x128xf32> to vector<4xf32>
    %2 = vector.shape_cast %1 : vector<4xf32> to vector<4x1xf32>
    %3 = vector.broadcast %2 : vector<4x1xf32> to vector<4x128xf32>
    %4 = arith.subf %0, %3 : vector<4x128xf32>
    %cst_1 = arith.constant 6.66666651 : f32
    %5 = vector.broadcast %cst_1 : f32 to vector<4x128xf32>
    %6 = arith.mulf %4, %5 : vector<4x128xf32>
    %cst_2 = arith.constant -7.500000e+01 : f32
    %7 = vector.broadcast %cst_2 : f32 to vector<4x128xf32>
    %8 = arith.maximumf %6, %7 : vector<4x128xf32>
    %9 = math.exp %8 : vector<4x128xf32>
    %c0_3 = arith.constant 0 : index
    %c0_4 = arith.constant 0 : index
    %10 = vector.load %arg2[%c0_3, %c0_4] : memref<128x256xf32, #tpu.memory_space<vmem>>, vector<128x256xf32>
    %cst_5 = arith.constant dense<0.000000e+00> : vector<4x256xf32>
    %11 = tpu.matmul %9, %10, %cst_5 {dimension_numbers = #tpu.dot_dimension_numbers<[1], [0], [0], [1], [0, 0, 1, 1], [], []>} : vector<4x128xf32>, vector<128x256xf32>, vector<4x256xf32> -> vector<4x256xf32>
    %12 = vector.extract_strided_slice %11 {offsets = [0, 0], sizes = [4, 128], strides = [1, 1]} : vector<4x256xf32> to vector<4x128xf32>
    %13 = vector.extract_strided_slice %11 {offsets = [0, 128], sizes = [4, 128], strides = [1, 1]} : vector<4x256xf32> to vector<4x128xf32>
    %cst_6 = arith.constant 0.000000e+00 : f32
    %14 = vector.broadcast %cst_6 : f32 to vector<4x128xf32>
    %15 = arith.cmpf ogt, %13, %14 : vector<4x128xf32>
    %cst_7 = arith.constant 1.000000e+00 : f32
    %16 = vector.broadcast %cst_7 : f32 to vector<4x128xf32>
    %17 = arith.select %15, %13, %16 : vector<4x128xi1>, vector<4x128xf32>
    %18 = tpu.reciprocal %17 {approx = true} : vector<4x128xf32> -> vector<4x128xf32>
    %19 = arith.mulf %17, %18 : vector<4x128xf32>
    %cst_8 = arith.constant 2.000000e+00 : f32
    %20 = vector.broadcast %cst_8 : f32 to vector<4x128xf32>
    %21 = arith.subf %20, %19 : vector<4x128xf32>
    %22 = arith.mulf %18, %21 : vector<4x128xf32>
    %23 = arith.mulf %12, %22 : vector<4x128xf32>
    %c0_9 = arith.constant 0 : index
    %c0_10 = arith.constant 0 : index
    %24 = vector.load %arg3[%c0_9, %c0_10] : memref<4x128xf32, #tpu.memory_space<vmem>>, vector<4x128xf32>
    tpu.vector_store %arg3[%c0_9, %c0_10], %23 {strides = array<i32>} : memref<4x128xf32, #tpu.memory_space<vmem>>, vector<4x128xf32>,
    return
  }
  func.func @transform_0(%arg0: i32) -> (i32, i32) {
    %c0_i32 = arith.constant 0 : i32
    %c0_i32_0 = arith.constant 0 : i32
    return %arg0, %c0_i32 : i32, i32
  }
  func.func @transform_1(%arg0: i32) -> (i32, i32) {
    %c0_i32 = arith.constant 0 : i32
    %c0_i32_0 = arith.constant 0 : i32
    %c0_i32_1 = arith.constant 0 : i32
    return %c0_i32, %c0_i32_0 : i32, i32
  }
  func.func @transform_2(%arg0: i32) -> (i32, i32) {
    %c0_i32 = arith.constant 0 : i32
    %c0_i32_0 = arith.constant 0 : i32
    return %arg0, %c0_i32 : i32, i32
  }
}

</mosaic_0001>

<llo_original>
// kernel: tpu_custom_call.1
$region0: #{tpu_custom_call.1}
  #allocation0 [shape = 'u32[]', space=smem, size = 0x4, offset = 0x4, fixed_abs, tag = 'smem constant byte address 0x4 - core index']
  #allocation1 [shape = 'u32[144,128]{1,0:T(1,128)}', space=vmem, size = 0x12000, scoped, tag = 'internal scratch']
  %s0 = inlined_call_operand.hbm [shape: f32[4,128], index: 0, kind: input, shape index: {}]
  %s1 = inlined_call_operand.hbm [shape: f32[128,256], index: 1, kind: input, shape index: {}]
  %s2 = inlined_call_operand.hbm [shape: f32[4,128], index: 2, kind: output, shape index: {}]
  %s3 = sld [smem:[#allocation0]]
  $region26: #{tpu_custom_call.1} parent=0
    _
  %s5 = ssub.s32 1, %s3
  %s6 = scalar_select 0, %s5, %s3
  $region1: #{tpu_custom_call.1} parent=0
    #allocation2 [shape = 'u8[2048]{0}', space=vmem, size = 0x800, scoped, tag = 'input window, operand 0, single buffered']
    #allocation3 [shape = 's32[1]{0}', space=sflag, size = 0x4, scoped, tag = 'scoped memory for tpu_custom_call.1']
    #allocation4 [shape = 's32[1]{0}', space=sflag, size = 0x4, scoped, tag = 'scoped memory for tpu_custom_call.1']
    #allocation5 [shape = 'u8[131072]{0}', space=vmem, size = 0x20000, scoped, tag = 'input window, operand 1, single buffered']
    #allocation6 [shape = 's32[1]{0}', space=sflag, size = 0x4, scoped, tag = 'scoped memory for tpu_custom_call.1']
    #allocation7 [shape = 'u8[2048]{0}', space=vmem, size = 0x800, scoped, tag = 'output window, operand 0, single buffered']
    %7 = vsyncpa [#allocation3], 0
    %8 = vsyncpa [#allocation6], 0
    %9 = vsyncpa [#allocation4], 0
    // Predicated region
    $region2: #{tpu_custom_call.1} parent=1 // pred_check
      _
    $region3: #{tpu_custom_call.1} parent=1 // pred_check_branch
      %11 = sbr.rel (0) target = $region5
    $region4: #{tpu_custom_call.1} parent=1 // pred_region
      %s13 = ssub.s32 64, 64
      %14 = vsyncadd [#allocation3], %s13
      %s16 = sshll.u32 [#allocation2], 4
      %s17 = int_to_ptr.vmem [resolvable:$true] %s16
      %19 = dma.hbm_to_vmem [thread:$0]  %s0, 64, %s17, [#allocation3]
    $region5: #{tpu_custom_call.1} parent=1 // pred_fallthru
      _
    // Predicated region
    $region6: #{tpu_custom_call.1} parent=1 // pred_check
      _
    $region7: #{tpu_custom_call.1} parent=1 // pred_check_branch
      %21 = sbr.rel (0) target = $region9
    $region8: #{tpu_custom_call.1} parent=1 // pred_region
      %s23 = ssub.s32 4096, 4096
      %24 = vsyncadd [#allocation6], %s23
      %s25 = sshll.u32 [#allocation5], 4
      %s26 = int_to_ptr.vmem [resolvable:$true] %s25
      %31 = dma.hbm_to_vmem [thread:$0]  %s1, 4096, %s26, [#allocation6], 256, 256, 16
    $region9: #{tpu_custom_call.1} parent=1 // pred_fallthru
      _
    // Predicated region
    $region10: #{tpu_custom_call.1} parent=1 // pred_check
      _
    $region11: #{tpu_custom_call.1} parent=1 // pred_check_branch
      %33 = sbr.rel (0) target = $region13
    $region12: #{tpu_custom_call.1} parent=1 // pred_region
      %34 = dma.done [#allocation3], 64
    $region13: #{tpu_custom_call.1} parent=1 // pred_fallthru
      _
    // Predicated region
    $region14: #{tpu_custom_call.1} parent=1 // pred_check
      _
    $region15: #{tpu_custom_call.1} parent=1 // pred_check_branch
      %36 = sbr.rel (0) target = $region17
    $region16: #{tpu_custom_call.1} parent=1 // pred_region
      %37 = dma.done [#allocation6], 4096
    $region17: #{tpu_custom_call.1} parent=1 // pred_fallthru
      _
    %v38 = vld [vmem:[#allocation2] sm:$0xf]
    %vm39 = vcmask 1043456
    %v40 = vsel %vm39, %v38, -inf
    %41 = vmax.xlane.f32.xlu0 %v40
    %v42 = vpop.xlane.xlu0 %41
    %v43 = vsub.f32 %v38, %v42
    %v44 = vmul.f32 %v43, 6.6666665
    %v45 = vmax.f32 %v44, -75.0
    %v46 = vmul.f32 %v45, 1.442695
    %v47 = vpow.pop %v46
    %v48 = vld [vmem:[#allocation5] sm:$0xff]
    %v49 = vld [vmem:[#allocation5 + $0x8] sm:$0xff]
    %v50 = vld [vmem:[#allocation5 + $0x10] sm:$0xff]
    %v51 = vld [vmem:[#allocation5 + $0x18] sm:$0xff]
    %v52 = vld [vmem:[#allocation5 + $0x20] sm:$0xff]
    %v53 = vld [vmem:[#allocation5 + $0x28] sm:$0xff]
    %v54 = vld [vmem:[#allocation5 + $0x30] sm:$0xff]
    %v55 = vld [vmem:[#allocation5 + $0x38] sm:$0xff]
    %v56 = vld [vmem:[#allocation5 + $0x40] sm:$0xff]
    %v57 = vld [vmem:[#allocation5 + $0x48] sm:$0xff]
    %v58 = vld [vmem:[#allocation5 + $0x50] sm:$0xff]
    %v59 = vld [vmem:[#allocation5 + $0x58] sm:$0xff]
    %v60 = vld [vmem:[#allocation5 + $0x60] sm:$0xff]
    %v61 = vld [vmem:[#allocation5 + $0x68] sm:$0xff]
    %v62 = vld [vmem:[#allocation5 + $0x70] sm:$0xff]
    %v63 = vld [vmem:[#allocation5 + $0x78] sm:$0xff]
    %v64 = vld [vmem:[#allocation5 + $0x80] sm:$0xff]
    %v65 = vld [vmem:[#allocation5 + $0x88] sm:$0xff]
    %v66 = vld [vmem:[#allocation5 + $0x90] sm:$0xff]
    %v67 = vld [vmem:[#allocation5 + $0x98] sm:$0xff]
    %v68 = vld [vmem:[#allocation5 + $0xa0] sm:$0xff]
    %v69 = vld [vmem:[#allocation5 + $0xa8] sm:$0xff]
    %v70 = vld [vmem:[#allocation5 + $0xb0] sm:$0xff]
    %v71 = vld [vmem:[#allocation5 + $0xb8] sm:$0xff]
    %v72 = vld [vmem:[#allocation5 + $0xc0] sm:$0xff]
    %v73 = vld [vmem:[#allocation5 + $0xc8] sm:$0xff]
    %v74 = vld [vmem:[#allocation5 + $0xd0] sm:$0xff]
    %v75 = vld [vmem:[#allocation5 + $0xd8] sm:$0xff]
    %v76 = vld [vmem:[#allocation5 + $0xe0] sm:$0xff]
    %v77 = vld [vmem:[#allocation5 + $0xe8] sm:$0xff]
    %v78 = vld [vmem:[#allocation5 + $0xf0] sm:$0xff]
    %v79 = vld [vmem:[#allocation5 + $0xf8] sm:$0xff]
    %80 = vmatprep.subr.mxu0 %v49
    %81 = vmatpush1.msra.mxu0 %v48
    %82 = vmatprep.subr.mxu0 %v51
    %83 = vmatpush1.msra.mxu0 %v50
    %84 = vmatprep.subr.mxu0 %v53
    %85 = vmatpush1.msra.mxu0 %v52
    %86 = vmatprep.subr.mxu0 %v55
    %87 = vmatpush1.msra.mxu0 %v54
    %88 = vmatprep.subr.mxu0 %v57
    %89 = vmatpush1.msra.mxu0 %v56
    %90 = vmatprep.subr.mxu0 %v59
    %91 = vmatpush1.msra.mxu0 %v58
    %92 = vmatprep.subr.mxu0 %v61
    %93 = vmatpush1.msra.mxu0 %v60
    %94 = vmatprep.subr.mxu0 %v63
    %95 = vmatpush1.msra.mxu0 %v62
    %96 = vmatprep.subr.mxu0 %v65
    %97 = vmatpush1.msra.mxu0 %v64
    %98 = vmatprep.subr.mxu0 %v67
    %99 = vmatpush1.msra.mxu0 %v66
    %100 = vmatprep.subr.mxu0 %v69
    %101 = vmatpush1.msra.mxu0 %v68
    %102 = vmatprep.subr.mxu0 %v71
    %103 = vmatpush1.msra.mxu0 %v70
    %104 = vmatprep.subr.mxu0 %v73
    %105 = vmatpush1.msra.mxu0 %v72
    %106 = vmatprep.subr.mxu0 %v75
    %107 = vmatpush1.msra.mxu0 %v74
    %108 = vmatprep.subr.mxu0 %v77
    %109 = vmatpush1.msra.mxu0 %v76
    %110 = vmatprep.subr.mxu0 %v79
    %111 = vmatpush1.msra.mxu0 %v78
    %112 = vmatprep.subr.mxu0 0.0
    %113 = vmatpush1.msra.mxu0 0.0
    %114 = vmatprep.subr.mxu0 0.0
    %115 = vmatpush1.msra.mxu0 0.0
    %116 = vmatprep.subr.mxu0 0.0
    %117 = vmatpush1.msra.mxu0 0.0
    %118 = vmatprep.subr.mxu0 0.0
    %119 = vmatpush1.msra.mxu0 0.0
    %120 = vmatprep.subr.mxu0 0.0
    %121 = vmatpush1.msra.mxu0 0.0
    %122 = vmatprep.subr.mxu0 0.0
    %123 = vmatpush1.msra.mxu0 0.0
    %124 = vmatprep.subr.mxu0 0.0
    %125 = vmatpush1.msra.mxu0 0.0
    %126 = vmatprep.subr.mxu0 0.0
    %127 = vmatpush1.msra.mxu0 0.0
    %128 = vmatprep.subr.mxu0 0.0
    %129 = vmatpush1.msra.mxu0 0.0
    %130 = vmatprep.subr.mxu0 0.0
    %131 = vmatpush1.msra.mxu0 0.0
    %132 = vmatprep.subr.mxu0 0.0
    %133 = vmatpush1.msra.mxu0 0.0
    %134 = vmatprep.subr.mxu0 0.0
    %135 = vmatpush1.msra.mxu0 0.0
    %136 = vmatprep.subr.mxu0 0.0
    %137 = vmatpush1.msra.mxu0 0.0
    %138 = vmatprep.subr.mxu0 0.0
    %139 = vmatpush1.msra.mxu0 0.0
    %140 = vmatprep.subr.mxu0 0.0
    %141 = vmatpush1.msra.mxu0 0.0
    %142 = vmatprep.subr.mxu0 0.0
    %143 = vmatpush1.msra.mxu0 0.0
    %144 = vmatprep.mubr.f32.mxu0 0.0
    %145 = vmatmul.mubr.f32.gmra.mrb[0].mxu0 %v47
    %v146 = vpop.f32.mrb[0].mxu0
    %v147 = vadd.f32 0.0, %v146
    %v148 = vpop.f32.mrb[0].mxu0
    %v149 = vadd.f32 0.0, %v148
    %150 = vdwg.mxu0
    %vm151 = vcmp.gt.f32.partialorder %v149, 0.0
    %v152 = vsel %vm151, %v149, 1.0
    %v153 = vrcp.pop %v152
    %v154 = vmul.f32 %v152, %v153
    %v155 = vsub.f32 2.0, %v154
    %v156 = vmul.f32 %v153, %v155
    %v157 = vmul.f32 %v147, %v156
    %158 = vst [vmem:[#allocation7] sm:$0xf] %v157
    // Predicated region
    $region18: #{tpu_custom_call.1} parent=1 // pred_check
      _
    $region19: #{tpu_custom_call.1} parent=1 // pred_check_branch
      %160 = sbr.rel (0) target = $region21
    $region20: #{tpu_custom_call.1} parent=1 // pred_region
      %s162 = ssub.s32 64, 64
      %163 = vsyncadd [#allocation4], %s162
      %s165 = sshll.u32 [#allocation7], 4
      %s166 = int_to_ptr.vmem [resolvable:$true] %s165
      %168 = dma.vmem_to_hbm [thread:$0]  %s166, 64, %s2, [#allocation4]
    $region21: #{tpu_custom_call.1} parent=1 // pred_fallthru
      _
    // Predicated region
    $region22: #{tpu_custom_call.1} parent=1 // pred_check
      _
    $region23: #{tpu_custom_call.1} parent=1 // pred_check_branch
      %170 = sbr.rel (0) target = $region25
    $region24: #{tpu_custom_call.1} parent=1 // pred_region
      %171 = dma.done [#allocation4], 64
    $region25: #{tpu_custom_call.1} parent=1 // pred_fallthru
      _
    %172 = vsyncpa [#allocation3], 1
    %173 = vsyncpa [#allocation6], 1
    %174 = vsyncpa [#allocation4], 1

</llo_original>
